<compile_context>
chip_gen: v6e
topology: v6e:2x2x1
jax: 0.10.0
libtpu: 0.0.40
codegen_flags: <defaults>
</compile_context>

<pallas_src>
import functools
import math

import jax
import jax.numpy as jnp
import numpy as np
from jax.experimental import pallas as pl
from jax.experimental.pallas import tpu as pltpu


# ---------------------------------------------------------------------------
# Kernels
# ---------------------------------------------------------------------------

def _lane_col_index(lanes, width):
    """(1, lanes) int32 index-within-image-row.

    Valid because every column block starts at an image-row boundary
    (col_block is a multiple of width, or equals the full H*W extent).
    """
    col = jax.lax.broadcasted_iota(jnp.int32, (1, lanes), 1)
    if width & (width - 1) == 0:           # power of two: cheap AND
        return col & (width - 1)
    return col % width


def _normal_h_canonical_kernel(x_ref, o_ref, *, width):
    """Canonical taps [0, -1, 1]:  out = x[w+1] - x[w]  (replicate right edge)."""
    x = x_ref[...]
    lanes = x.shape[-1]
    is_last = _lane_col_index(lanes, width) == width - 1       # (1, lanes) mask
    right = pltpu.roll(x, lanes - 1, 1)                        # x[w+1] (wrapped)
    right = jnp.where(is_last, x, right)                       # replicate edge
    o_ref[...] = (right - x).astype(o_ref.dtype)


def _normal_h_general_kernel(w_ref, x_ref, o_ref, *, width, skip_left):
    """General per-channel taps (f32 accumulation).

    x_ref / o_ref : (rows, lanes) VMEM blocks; each block row is a run of
        complete image rows from a single (n, c) plane.
    w_ref         : (rows, 3) VMEM block of per-row taps [w0, w1, w2] (f32).
    """
    x = x_ref[...]
    lanes = x.shape[-1]
    col = _lane_col_index(lanes, width)                        # (1, lanes)
    w = w_ref[...].astype(jnp.float32)

    xf = x.astype(jnp.float32)
    right = pltpu.roll(x, lanes - 1, 1)                        # x[w+1] (wrapped)
    right = jnp.where(col == width - 1, x, right).astype(jnp.float32)
    acc = w[:, 1:2] * xf + w[:, 2:3] * right
    if not skip_left:                                          # static flag
        left = pltpu.roll(x, 1, 1)                             # x[w-1] (wrapped)
        left = jnp.where(col == 0, x, left).astype(jnp.float32)
        acc = acc + w[:, 0:1] * left
    o_ref[...] = acc.astype(o_ref.dtype)


# ---------------------------------------------------------------------------
# Block-size selection
# ---------------------------------------------------------------------------

_MAX_BLOCK_BYTES = 4 * 1024 * 1024   # hard cap: ~7 live blocks must fit v7x VMEM
_MIN_GRID_STEPS = 8                  # enough steps to occupy both v7x TensorCores


def _divisors(n):
    out = set()
    i = 1
    while i * i <= n:
        if n % i == 0:
            out.add(i)
            out.add(n // i)
        i += 1
    return sorted(out)


def _choose_blocks(nc, hw, width, elem_bytes):
    # Second-to-last block dim: multiple of 8 or the full extent.
    row_cands = [d for d in _divisors(nc) if d % 8 == 0 or d == nc]
    # Last block dim: multiple of lcm(width, 128) (lane-dense AND aligned to
    # image-row boundaries), else fall back to the full H*W extent.
    unit = width * 128 // math.gcd(width, 128)
    if hw % unit == 0:
        col_cands = [d for d in _divisors(hw) if d % unit == 0]
    else:
        # TODO(synk): awkward W (hw not a multiple of lcm(W,128)) forces
        # full-row blocks; for very large H*W this can exceed the 4 MiB cap.
        col_cands = [hw]

    row_min, col_min = min(row_cands), min(col_cands)
    min_block_bytes = row_min * col_min * elem_bytes
    total_bytes = nc * hw * elem_bytes

    # Cap block size, and shrink the cap further when the whole problem is
    # small so there are >= _MIN_GRID_STEPS steps (2-TC sharding on v7x).
    cap = min(_MAX_BLOCK_BYTES, max(1, total_bytes // _MIN_GRID_STEPS))
    cap = max(cap, min_block_bytes)

    best, best_bytes = (row_min, col_min), min_block_bytes
    for col in col_cands:
        for row in row_cands:
            b = row * col * elem_bytes
            if b <= cap and (b > best_bytes or (b == best_bytes and col > best[1])):
                best, best_bytes = (row, col), b
    return best


# ---------------------------------------------------------------------------
# Wrapper
# ---------------------------------------------------------------------------

def _canonical_flags(weight):
    """Host-side inspection of concrete taps -> (is_canonical, skip_left)."""
    if weight is None:
        return True, True
    try:
        w = np.asarray(jax.device_get(weight), dtype=np.float64).reshape(-1, 3)
    except Exception:          # abstract tracer: must keep the general path
        return False, False
    is_canon = bool(np.all(w[:, 0] == 0.0) and np.all(w[:, 1] == -1.0)
                    and np.all(w[:, 2] == 1.0))
    skip_left = bool(np.all(w[:, 0] == 0.0))
    return is_canon, skip_left


def normal_h_pallas(x, weight=None):
    """Forward pass of `normal_h`.

    x      : (N, C, H, W) array.
    weight : optional per-channel taps, shape (C, 3) (or (C, 1, 1, 3)).
             If None (or concretely equal to [0, -1, 1] per channel), the
             specialized canonical kernel `out = x[w+1] - x[w]` is used.
    """
    n, c, h, width = x.shape
    nc, hw = n * c, h * width
    x2 = x.reshape(nc, hw)

    elem_bytes = x.dtype.itemsize
    row_block, col_block = _choose_blocks(nc, hw, width, elem_bytes)
    grid = (nc // row_block, hw // col_block)   # H*W axis innermost (weight stays resident)
    block_bytes = row_block * col_block * elem_bytes

    x_spec = pl.BlockSpec((row_block, col_block), lambda i, j: (i, j))
    out_spec = pl.BlockSpec((row_block, col_block), lambda i, j: (i, j))
    vmem_limit = int(min(100 * 2**20, max(48 * 2**20, 8 * block_bytes)))
    compiler_params = pltpu.CompilerParams(
        dimension_semantics=("parallel", "parallel"),
        vmem_limit_bytes=vmem_limit,
    )
    out_shape = jax.ShapeDtypeStruct((nc, hw), x.dtype)

    is_canon, skip_left = _canonical_flags(weight)

    if is_canon:
        out2 = pl.pallas_call(
            functools.partial(_normal_h_canonical_kernel, width=width),
            out_shape=out_shape,
            grid_spec=pl.GridSpec(grid=grid, in_specs=[x_spec], out_specs=out_spec),
            compiler_params=compiler_params,
        )(x2)
    else:
        # Per-(n, c)-row taps in f32 (tiny (NC, 3) array).
        w_all = jnp.tile(jnp.asarray(weight).reshape(c, 3).astype(jnp.float32), (n, 1))
        w_spec = pl.BlockSpec((row_block, 3), lambda i, j: (i, 0))
        out2 = pl.pallas_call(
            functools.partial(_normal_h_general_kernel, width=width,
                              skip_left=skip_left),
            out_shape=out_shape,
            grid_spec=pl.GridSpec(grid=grid, in_specs=[w_spec, x_spec],
                                  out_specs=out_spec),
            compiler_params=compiler_params,
        )(w_all, x2)

    return out2.reshape(n, c, h, width)


# ---------------------------------------------------------------------------
# Pure-JAX references
# ---------------------------------------------------------------------------

def normal_h_reference(x, weight):
    left = jnp.concatenate([x[..., :1], x[..., :-1]], axis=-1)
    right = jnp.concatenate([x[..., 1:], x[..., -1:]], axis=-1)
    w = jnp.asarray(weight).reshape(-1, 3)
    w0 = w[:, 0][None, :, None, None]
    w1 = w[:, 1][None, :, None, None]
    w2 = w[:, 2][None, :, None, None]
    return w0 * left + w1 * x + w2 * right


def normal_h_reference_canonical(x):
    right = jnp.concatenate([x[..., 1:], x[..., -1:]], axis=-1)
    return right - x


if __name__ == "__main__":
    N, C, H, W = 2, 4, 16, 16

    key = jax.random.PRNGKey(0)
    kx, kw = jax.random.split(key)
    x = jax.random.normal(kx, (N, C, H, W), dtype=jnp.float32)

    # Module parameter at init: [0, -1, 1] repeated over channels (depthwise).
    weight = jnp.tile(jnp.array([[0.0, -1.0, 1.0]], dtype=jnp.float32), (C, 1))

    ref_canon = normal_h_reference_canonical(x)

    # 1) default taps (weight=None) -> specialized canonical kernel
    out_none = jax.block_until_ready(normal_h_pallas(x))
    # 2) explicit module weights -> host-side detection dispatches canonical kernel
    out_canon = jax.block_until_ready(normal_h_pallas(x, weight))
    # 3) random per-channel taps -> general kernel (exercises left-edge path)
    weight_rand = jax.random.normal(kw, (C, 3), dtype=jnp.float32)
    out_rand = jax.block_until_ready(normal_h_pallas(x, weight_rand))
    ref_rand = normal_h_reference(x, weight_rand)
    # 4) taps with w0 == 0 -> general kernel with static skip_left
    weight_nl = weight_rand.at[:, 0].set(0.0)
    out_nl = jax.block_until_ready(normal_h_pallas(x, weight_nl))
    ref_nl = normal_h_reference(x, weight_nl)

    if not jnp.allclose(out_none, ref_canon, atol=1e-5, rtol=1e-5):
        raise AssertionError("canonical (weight=None) output does not match reference")
    if not jnp.allclose(out_canon, ref_canon, atol=1e-5, rtol=1e-5):
        raise AssertionError("canonical (explicit weight) output does not match reference")
    if not jnp.allclose(out_rand, ref_rand, atol=1e-5, rtol=1e-5):
        raise AssertionError("general-taps output does not match reference")
    if not jnp.allclose(out_nl, ref_nl, atol=1e-5, rtol=1e-5):
        raise AssertionError("skip-left general-taps output does not match reference")

    print("KERNEL_OK")
</pallas_src>

<mosaic_0001>
module attributes {stable_mosaic.version = 11 : i64} {
  func.func @_normal_h_canonical_kernel(%arg0: i32, %arg1: i32, %arg2: memref<8x128xf32, #tpu.memory_space<vmem>>, %arg3: memref<8x128xf32, #tpu.memory_space<vmem>>) attributes {dimension_semantics = [#tpu.dimension_semantics<parallel>, #tpu.dimension_semantics<parallel>], iteration_bounds = array<i64: 1, 2>, scalar_prefetch = 0 : i64, scratch_operands = 0 : i64, tpu.core_type = #tpu.core_type<tc>, window_params = [{transform_indices = @transform_0, window_bounds = array<i64: 8, 128>}, {transform_indices = @transform_1, window_bounds = array<i64: 8, 128>}]} {
    %c0 = arith.constant 0 : index
    %c0_0 = arith.constant 0 : index
    %0 = vector.load %arg2[%c0, %c0_0] : memref<8x128xf32, #tpu.memory_space<vmem>>, vector<8x128xf32>
    %1 = tpu.iota {dimensions = array<i32: 1>} : vector<1x128xi32>
    %c15_i32 = arith.constant 15 : i32
    %2 = vector.broadcast %c15_i32 : i32 to vector<1x128xi32>
    %3 = arith.andi %1, %2 : vector<1x128xi32>
    %c15_i32_1 = arith.constant 15 : i32
    %4 = vector.broadcast %c15_i32_1 : i32 to vector<1x128xi32>
    %5 = arith.cmpi eq, %3, %4 : vector<1x128xi32>
    %c127_i32 = arith.constant 127 : i32
    %6 = tpu.dynamic_rotate %0 by %c127_i32 dim 1 : vector<8x128xf32>, i32 -> vector<8x128xf32>
    %7 = vector.shape_cast %5 : vector<1x128xi1> to vector<1x128xi1>
    %8 = vector.broadcast %7 : vector<1x128xi1> to vector<8x128xi1>
    %9 = arith.select %8, %0, %6 : vector<8x128xi1>, vector<8x128xf32>
    %10 = arith.subf %9, %0 : vector<8x128xf32>
    %c0_2 = arith.constant 0 : index
    %c0_3 = arith.constant 0 : index
    %11 = vector.load %arg3[%c0_2, %c0_3] : memref<8x128xf32, #tpu.memory_space<vmem>>, vector<8x128xf32>
    tpu.vector_store %arg3[%c0_2, %c0_3], %10 {strides = array<i32>} : memref<8x128xf32, #tpu.memory_space<vmem>>, vector<8x128xf32>,
    return
  }
  func.func @transform_0(%arg0: i32, %arg1: i32) -> (i32, i32) {
    %c0_i32 = arith.constant 0 : i32
    return %arg0, %arg1 : i32, i32
  }
  func.func @transform_1(%arg0: i32, %arg1: i32) -> (i32, i32) {
    %c0_i32 = arith.constant 0 : i32
    return %arg0, %arg1 : i32, i32
  }
}

</mosaic_0001>

<llo_original>
// kernel: tpu_custom_call.1
$region0: #{tpu_custom_call.1}
  #allocation0 [shape = 'u32[]', space=smem, size = 0x4, offset = 0x4, fixed_abs, tag = 'smem constant byte address 0x4 - core index']
  #allocation1 [shape = 'u32[144,128]{1,0:T(1,128)}', space=vmem, size = 0x12000, scoped, tag = 'internal scratch']
  %s0 = inlined_call_operand.hbm [shape: f32[8,256], index: 0, kind: input, shape index: {}]
  %s1 = inlined_call_operand.hbm [shape: f32[8,256], index: 1, kind: output, shape index: {}]
  %s2 = sld [smem:[#allocation0]]
  $region41: #{tpu_custom_call.1} parent=0
    _
  %s4 = ssub.s32 1, %s2
  %s5 = scalar_select 0, %s4, %s2
  $region1: #{tpu_custom_call.1} parent=0
    #allocation2 [shape = 'u8[8192]{0}', space=vmem, size = 0x2000, scoped, tag = 'input window, operand 0']
    #allocation3 [shape = 's32[2]{0}', space=sflag, size = 0x8, scoped, tag = 'scoped memory for tpu_custom_call.1']
    #allocation4 [shape = 's32[2]{0}', space=sflag, size = 0x8, scoped, tag = 'scoped memory for tpu_custom_call.1']
    #allocation5 [shape = 'u8[8192]{0}', space=vmem, size = 0x2000, scoped, tag = 'output window, operand 0']
    %6 = vsyncpa [#allocation3], 0
    %s7 = scalar_lea.sflag [#allocation3], 1
    %8 = vsyncpa %s7, 0
    %9 = vsyncpa [#allocation4], 0
    %s10 = scalar_lea.sflag [#allocation4], 1
    %11 = vsyncpa %s10, 0
    loop: start=0, step=1, limit=4
    $region2: #{tpu_custom_call.1} parent=1 // loop_pre_header
      _
    $region3: #{tpu_custom_call.1} parent=1 // loop_header
      %s13 = sphi 0, %s17
      %p14 = scmp.ge.s32.totalorder %s13, 4
      %s20 = sphi 0, %s32
      %s21 = sphi 0, %s28
      %s22 = sphi 0, %s20
      %s23 = sphi 0, %s21
      %s24 = sphi 0, %s22
      %s25 = sphi 0, %s23
      %s37 = sphi 0, %s39
      %s40 = sphi 0, %s37
      %s41 = sphi 0, %s40
      %s57 = sphi 0, %s41
      %s65 = sphi 0, %s67
      %s68 = sphi 0, %s65
      %s69 = sphi 0, %s68
      %s85 = sphi 0, %s69
    $region4: #{tpu_custom_call.1} parent=1 // loop_header_branch
      %16 = sbr.rel (%p14) target = $region8
    $region5: #{tpu_custom_call.1} parent=1 // loop_body
      %s18 = ssub.s32 %s13, 1
      %s19 = ssub.s32 %s13, 2
      %s26 = sadd.s32 1, %s21
      %p27 = scmp.ge.s32.totalorder %s26, 2
      %s28 = scalar_select %p27, 0, %s26
      %s29 = sadd.s32 1, %s20
      %s30 = scalar_select %p27, %s29, %s20
      %p31 = scmp.ge.s32.totalorder %s30, 1
      %s32 = scalar_select %p31, 0, %s30
      %s33 = ssub.s32 %s20, %s32
      %s34 = ssub.s32 %s21, %s28
      %s35 = sor.u32 %s33, %s34
      %p36 = scmp.eq.s32.totalorder %s35, 0
      %s38 = sadd.s32 %s37, 1
      %s39 = scalar_select %p36, %s37, %s38
      %p42 = pneg %p36
      %p43 = scmp.eq.s32.totalorder %s13, 1
      %p44 = por %p42, %p43
      %p45 = scmp.ne.s32.totalorder %s37, %s40
      %p46 = scmp.eq.s32.totalorder %s13, 0
      %p47 = por %p45, %p46
      %p48 = scmp.ne.s32.totalorder %s37, %s40
      %p49 = scmp.eq.s32.totalorder %s18, 1
      %p50 = por %p48, %p49
      %p51 = scmp.ne.s32.totalorder %s40, %s41
      %p52 = scmp.eq.s32.totalorder %s18, 0
      %p53 = por %p51, %p52
      %p54 = scmp.ne.s32.totalorder %s40, %s41
      %p55 = scmp.eq.s32.totalorder %s19, 1
      %p56 = por %p54, %p55
      %p58 = scmp.ne.s32.totalorder %s41, %s57
      %p59 = scmp.eq.s32.totalorder %s19, 0
      %p60 = por %p58, %p59
      %s61 = ssub.s32 %s20, %s32
      %s62 = ssub.s32 %s21, %s28
      %s63 = sor.u32 %s61, %s62
      %p64 = scmp.eq.s32.totalorder %s63, 0
      %s66 = sadd.s32 %s65, 1
      %s67 = scalar_select %p64, %s65, %s66
      %p70 = pneg %p64
      %p71 = scmp.eq.s32.totalorder %s13, 1
      %p72 = por %p70, %p71
      %p73 = scmp.ne.s32.totalorder %s65, %s68
      %p74 = scmp.eq.s32.totalorder %s13, 0
      %p75 = por %p73, %p74
      %p76 = scmp.ne.s32.totalorder %s65, %s68
      %p77 = scmp.eq.s32.totalorder %s18, 1
      %p78 = por %p76, %p77
      %p79 = scmp.ne.s32.totalorder %s68, %s69
      %p80 = scmp.eq.s32.totalorder %s18, 0
      %p81 = por %p79, %p80
      %p82 = scmp.ne.s32.totalorder %s68, %s69
      %p83 = scmp.eq.s32.totalorder %s19, 1
      %p84 = por %p82, %p83
      %p86 = scmp.ne.s32.totalorder %s69, %s85
      %p87 = scmp.eq.s32.totalorder %s19, 0
      %p88 = por %p86, %p87
      %p89 = scmp.le.s32.totalorder 1, %s13
      %p90 = scmp.lt.s32.totalorder %s13, 3
      %p91 = pnand %p89, %p90
      %p92 = pneg %p91
      // Predicated region
      $region9: #{tpu_custom_call.1} parent=5 // pred_check
        _
      $region10: #{tpu_custom_call.1} parent=5 // pred_check_branch
        %94 = sbr.rel (%p91) target = $region12
      $region11: #{tpu_custom_call.1} parent=5 // pred_region
        %s95 = ssub.s32 %s13, 1
      $region12: #{tpu_custom_call.1} parent=5 // pred_fallthru
        _
      %p96 = scmp.lt.s32.totalorder %s13, 2
      // Predicated region
      $region13: #{tpu_custom_call.1} parent=5 // pred_check
        %p97 = pneg %p96
      $region14: #{tpu_custom_call.1} parent=5 // pred_check_branch
        %99 = sbr.rel (%p97) target = $region16
      $region15: #{tpu_custom_call.1} parent=5 // pred_region
        // Predicated region
        $region17: #{tpu_custom_call.1} parent=15 // pred_check
          %p100 = pneg %p47
        $region18: #{tpu_custom_call.1} parent=15 // pred_check_branch
          %102 = sbr.rel (%p100) target = $region20
        $region19: #{tpu_custom_call.1} parent=15 // pred_region
          %s103 = sand.u32 %s37, 1
          %s104 = scalar_lea.sflag [#allocation3], %s103
          %s105 = sand.u32 %s37, 1
          %s106 = smul.addr %s105, 8
          %s107 = scalar_lea.vmem [#allocation2], %s106
          %s109 = ssub.s32 128, 128
          %110 = vsyncadd %s104, %s109
          %s111 = smul.addr %s20, 2
          %s112 = sadd.s32 %s21, %s111
          %s113 = smul.addr %s112, 128
          %s114 = scalar_lea.hbm %s0, %s113
          %s116 = sshll.u32 %s107, 4
          %s117 = int_to_ptr.vmem [resolvable:$true] %s116
          %119 = dma.hbm_to_vmem [thread:$0]  %s114, 128, %s117, %s104
        $region20: #{tpu_custom_call.1} parent=15 // pred_fallthru
          _
      $region16: #{tpu_custom_call.1} parent=5 // pred_fallthru
        _
      %p120 = scmp.le.s32.totalorder 1, %s13
      %p121 = scmp.lt.s32.totalorder %s13, 3
      %p122 = pnand %p120, %p121
      %p123 = pneg %p122
      // Predicated region
      $region21: #{tpu_custom_call.1} parent=5 // pred_check
        _
      $region22: #{tpu_custom_call.1} parent=5 // pred_check_branch
        %125 = sbr.rel (%p122) target = $region24
      $region23: #{tpu_custom_call.1} parent=5 // pred_region
        %s126 = ssub.s32 %s13, 1
        %s127 = sand.u32 %s40, 1
        %s128 = scalar_lea.sflag [#allocation3], %s127
        %s129 = sand.u32 %s40, 1
        %s130 = smul.addr %s129, 8
        %s131 = scalar_lea.vmem [#allocation2], %s130
        // Predicated region
        $region25: #{tpu_custom_call.1} parent=23 // pred_check
          %p132 = pneg %p53
        $region26: #{tpu_custom_call.1} parent=23 // pred_check_branch
          %134 = sbr.rel (%p132) target = $region28
        $region27: #{tpu_custom_call.1} parent=23 // pred_region
          %135 = dma.done %s128, 128
        $region28: #{tpu_custom_call.1} parent=23 // pred_fallthru
          _
        %s136 = sand.u32 %s40, 1
        %s137 = scalar_lea.sflag [#allocation3], %s136
        %s138 = sand.u32 %s40, 1
        %s139 = smul.addr %s138, 8
        %s140 = scalar_lea.vmem [#allocation2], %s139
        %p141 = pneg %p53
        %p142 = pneg %p50
        %p143 = pneg %p81
        %p144 = pneg %p78
        %s145 = sand.u32 %s68, 1
        %s146 = scalar_lea.sflag [#allocation4], %s145
        %s147 = sand.u32 %s68, 1
        %s148 = smul.addr %s147, 8
        %s149 = scalar_lea.vmem [#allocation5], %s148
        %v150 = vld [vmem:[%s131] sm:$0xff]
        %v151 = vlaneseq
        %v152 = vand.u32 %v151, 127
        %v153 = vand.u32 %v152, 15
        %vm154 = vcmp.eq.s32.totalorder %v153, 15
        %155 = vrot.lane.b32.xlu0 %v150, 127
        %v156 = vpop.permute.xlu0 %155
        %v157 = vsel %vm154, 1, 0
        %vm158 = vcmp.eq.s32.totalorder %v157, 1
        %v159 = vsel %vm158, %v150, %v156
        %v160 = vsub.f32 %v159, %v150
        %161 = vst [vmem:[%s149] sm:$0xff] %v160
        %s162 = sand.u32 %s68, 1
        %s163 = scalar_lea.sflag [#allocation4], %s162
        %s164 = sand.u32 %s68, 1
        %s165 = smul.addr %s164, 8
        %s166 = scalar_lea.vmem [#allocation5], %s165
        // Predicated region
        $region29: #{tpu_custom_call.1} parent=23 // pred_check
          %p167 = pneg %p78
        $region30: #{tpu_custom_call.1} parent=23 // pred_check_branch
          %169 = sbr.rel (%p167) target = $region32
        $region31: #{tpu_custom_call.1} parent=23 // pred_region
          %s171 = ssub.s32 128, 128
          %172 = vsyncadd %s163, %s171
          %s173 = smul.addr %s22, 2
          %s174 = sadd.s32 %s23, %s173
          %s175 = smul.addr %s174, 128
          %s176 = scalar_lea.hbm %s1, %s175
          %s178 = sshll.u32 %s166, 4
          %s179 = int_to_ptr.vmem [resolvable:$true] %s178
          %181 = dma.vmem_to_hbm [thread:$0]  %s179, 128, %s176, %s163
        $region32: #{tpu_custom_call.1} parent=23 // pred_fallthru
          _
      $region24: #{tpu_custom_call.1} parent=5 // pred_fallthru
        _
      %p182 = scmp.le.s32.totalorder 2, %s13
      // Predicated region
      $region33: #{tpu_custom_call.1} parent=5 // pred_check
        %p183 = pneg %p182
      $region34: #{tpu_custom_call.1} parent=5 // pred_check_branch
        %185 = sbr.rel (%p183) target = $region36
      $region35: #{tpu_custom_call.1} parent=5 // pred_region
        %s186 = ssub.s32 %s13, 2
        // Predicated region
        $region37: #{tpu_custom_call.1} parent=35 // pred_check
          %p187 = pneg %p84
        $region38: #{tpu_custom_call.1} parent=35 // pred_check_branch
          %189 = sbr.rel (%p187) target = $region40
        $region39: #{tpu_custom_call.1} parent=35 // pred_region
          %s190 = sand.u32 %s69, 1
          %s191 = scalar_lea.sflag [#allocation4], %s190
          %s192 = sand.u32 %s69, 1
          %s193 = smul.addr %s192, 8
          %s194 = scalar_lea.vmem [#allocation5], %s193
          %195 = dma.done %s191, 128
        $region40: #{tpu_custom_call.1} parent=35 // pred_fallthru
          _
      $region36: #{tpu_custom_call.1} parent=5 // pred_fallthru
        _
    $region6: #{tpu_custom_call.1} parent=1 // loop_footer
      %s17 = sadd.s32 1, %s13
    $region7: #{tpu_custom_call.1} parent=1 // loop_footer_branch
      %12 = sbr.rel target = $region3
    $region8: #{tpu_custom_call.1} parent=1 // loop_exit
      _
    %196 = vsyncpa [#allocation3], 1
    %s197 = scalar_lea.sflag [#allocation3], 1
    %198 = vsyncpa %s197, 1
    %199 = vsyncpa [#allocation4], 1
    %s200 = scalar_lea.sflag [#allocation4], 1
    %201 = vsyncpa %s200, 1

</llo_original>
